<compile_context>
chip_gen: v6e
topology: v6e:2x2x1
jax: 0.10.0
libtpu: 0.0.40
codegen_flags: <defaults>
</compile_context>

<pallas_src>
import jax
import jax.numpy as jnp
from jax.experimental import pallas as pl
from jax.experimental.pallas import tpu as pltpu


_VMEM_BLOCK_BUDGET = 24 * 1024 * 1024  # ~half of v7x's 64 MiB VMEM per core


def _choose_batch_tile(B, N, C, x_itemsize, has_mask):
    """Largest batch tile TB that (a) divides B (no padding / extra HBM copy),
    (b) fits the VMEM budget with double-buffered blocks + f32 temporaries,
    (c) leaves >=2 grid steps when B >= 2 (v7x megacore split)."""
    per_b = (2 * N * C * x_itemsize          # x input block, double-buffered
             + 2 * N * C * 4 * 2             # in-kernel f32 temporaries (xf, x*x)
             + (2 * N * x_itemsize if has_mask else 0)
             + 2 * C * x_itemsize            # output block, double-buffered
             + 16 * N * 4)                   # small (1,N) per-row tensors
    cap = max(1, _VMEM_BLOCK_BUDGET // per_b)
    cap = min(cap, B)
    if B >= 2:
        cap = min(cap, max(1, B // 2))       # >=2 grid steps for the parallel axis
    tb = 1
    for d in range(1, cap + 1):
        if B % d == 0:
            tb = d
    return tb, per_b


def _max_agg_body(x, m_l):
    """x: (TB,N,C) native dtype; m_l: (TB,1,N) f32 mask or None -> (TB,1,C)."""
    tb, n, c = x.shape
    xf = x.astype(jnp.float32)

    # Row squared-norms on the MXU (NT matvec vs. a ones vector) so the result
    # is produced lane-major as (TB,1,N) with no XLU reduce / relayout.
    ones = jnp.ones((tb, 1, c), dtype=jnp.float32)
    sq_l = jnp.einsum("bkc,bnc->bkn", ones, xf * xf,
                      preferred_element_type=jnp.float32)            # (TB,1,N)
    # Exact normalization factor (matches F.normalize's eps=1e-12 clamp).
    inv_l = 1.0 / jnp.maximum(jnp.sqrt(sq_l), 1e-12)                  # (TB,1,N)

    mv_l = inv_l if m_l is None else m_l * inv_l                      # (TB,1,N)
    s = jnp.einsum("bkn,bnc->bkc", mv_l, xf,
                   preferred_element_type=jnp.float32)                # (TB,1,C)
    w = inv_l * jnp.einsum("bkc,bnc->bkn", s, xf,
                           preferred_element_type=jnp.float32)        # (TB,1,N)
    if m_l is not None:
        w = w - (1.0 - m_l) * 999.0

    # First-occurrence argmax over N, then exact one-hot row gather on the MXU.
    w_max = jnp.max(w, axis=2, keepdims=True)                         # (TB,1,1)
    ids = jax.lax.broadcasted_iota(jnp.int32, (tb, 1, n), 2)          # (TB,1,N)
    idx = jnp.min(jnp.where(w >= w_max, ids, n), axis=2, keepdims=True)
    sel = (ids == idx).astype(x.dtype)                                # one-hot (TB,1,N)
    return jnp.einsum("bkn,bnc->bkc", sel, x,
                      preferred_element_type=jnp.float32)             # (TB,1,C)


def _max_agg_kernel_masked(x_ref, m_ref, out_ref):
    agg = _max_agg_body(x_ref[...], m_ref[...].astype(jnp.float32))
    out_ref[...] = agg.astype(out_ref.dtype)


def _max_agg_kernel_nomask(x_ref, out_ref):
    agg = _max_agg_body(x_ref[...], None)
    out_ref[...] = agg.astype(out_ref.dtype)


def max_aggregation_head(x, mask=None):
    """x: (B,N,C) float; mask: (B,N,1)/(B,N) 0-1 values or None. Returns (B,C)."""
    B, N, C = x.shape
    tb, per_b = _choose_batch_tile(B, N, C, x.dtype.itemsize, mask is not None)
    # TODO(synk): for very large N*C (a single (1,N,C) block + f32 temporaries
    # exceeding VMEM) this needs an inner N-tiled pipeline (accumulate s / sq
    # over N-tiles, then a second scan for the running argmax) instead of one
    # resident block per batch tile.
    req = tb * per_b
    vmem_limit = int(min(max(req * 3 // 2, 32 * 1024 * 1024), 48 * 1024 * 1024))

    grid = (B // tb,)
    x_spec = pl.BlockSpec((tb, N, C), lambda b: (b, 0, 0))
    out_spec = pl.BlockSpec((tb, 1, C), lambda b: (b, 0, 0))
    out_shape = jax.ShapeDtypeStruct((B, 1, C), x.dtype)
    compiler_params = pltpu.CompilerParams(
        dimension_semantics=("parallel",), vmem_limit_bytes=vmem_limit)

    if mask is None:
        out = pl.pallas_call(
            _max_agg_kernel_nomask,
            out_shape=out_shape,
            grid=grid,
            in_specs=[x_spec],
            out_specs=out_spec,
            compiler_params=compiler_params,
        )(x)
    else:
        # Ship the mask lane-major as (B,1,N): consumed directly in that layout.
        m = jnp.reshape(mask, (B, 1, N)).astype(x.dtype)
        m_spec = pl.BlockSpec((tb, 1, N), lambda b: (b, 0, 0))
        out = pl.pallas_call(
            _max_agg_kernel_masked,
            out_shape=out_shape,
            grid=grid,
            in_specs=[x_spec, m_spec],
            out_specs=out_spec,
            compiler_params=compiler_params,
        )(x, m)

    return out.reshape(B, C)


def _reference(x, mask=None):
    """Pure-JAX reference reproducing the PyTorch forward."""
    x32 = x.astype(jnp.float32)
    norm = jnp.maximum(jnp.linalg.norm(x32, axis=-1, keepdims=True), 1e-12)
    x_norm = x32 / norm
    sim = jnp.einsum("bnc,bmc->bnm", x_norm, x_norm)
    if mask is not None:
        m = mask.reshape(x.shape[0], x.shape[1], 1).astype(jnp.float32)
        weight = jnp.einsum("bnm,bmo->bno", sim, m)[..., 0]
        weight = weight - (1.0 - m[..., 0]) * 999.0
    else:
        weight = jnp.sum(sim, axis=-1)
    idx = jnp.argmax(weight, axis=-1)
    return x[jnp.arange(x.shape[0]), idx]


if __name__ == "__main__":
    key = jax.random.PRNGKey(0)

    # --- small test ---
    B, N, C = 2, 8, 32
    kx, km, k2 = jax.random.split(key, 3)
    x = jax.random.normal(kx, (B, N, C), dtype=jnp.float32)
    mask = (jax.random.uniform(km, (B, N, 1)) > 0.3).astype(jnp.float32)
    mask = mask.at[:, 0, :].set(1.0)  # every row has at least one valid token

    out_masked = jax.block_until_ready(max_aggregation_head(x, mask))
    assert out_masked.shape == (B, C)
    assert jnp.allclose(out_masked, _reference(x, mask), atol=1e-5), "masked path mismatch"

    out_nomask = jax.block_until_ready(max_aggregation_head(x, None))
    assert jnp.allclose(out_nomask, _reference(x, None), atol=1e-5), "no-mask path mismatch"

    # --- larger batch (multi-step grid, TB a divisor of B, no padding) ---
    B2 = 10
    kx2, km2 = jax.random.split(k2)
    x2 = jax.random.normal(kx2, (B2, N, C), dtype=jnp.float32)
    mask2 = (jax.random.uniform(km2, (B2, N, 1)) > 0.3).astype(jnp.float32)
    mask2 = mask2.at[:, 0, :].set(1.0)

    out2 = jax.block_until_ready(max_aggregation_head(x2, mask2))
    assert out2.shape == (B2, C)
    assert jnp.allclose(out2, _reference(x2, mask2), atol=1e-5), "tiled masked path mismatch"

    out2n = jax.block_until_ready(max_aggregation_head(x2, None))
    assert jnp.allclose(out2n, _reference(x2, None), atol=1e-5), "tiled no-mask path mismatch"

    print("KERNEL_OK")
</pallas_src>

<mosaic_0001>
module attributes {stable_mosaic.version = 11 : i64} {
  func.func @_max_agg_kernel_masked(%arg0: i32, %arg1: memref<1x8x32xf32, #tpu.memory_space<vmem>>, %arg2: memref<1x1x8xf32, #tpu.memory_space<vmem>>, %arg3: memref<1x1x32xf32, #tpu.memory_space<vmem>>) attributes {dimension_semantics = [#tpu.dimension_semantics<parallel>], iteration_bounds = array<i64: 2>, scalar_prefetch = 0 : i64, scratch_operands = 0 : i64, tpu.core_type = #tpu.core_type<tc>, window_params = [{transform_indices = @transform_0, window_bounds = array<i64: 1, 8, 32>}, {transform_indices = @transform_1, window_bounds = array<i64: 1, 1, 8>}, {transform_indices = @transform_2, window_bounds = array<i64: 1, 1, 32>}]} {
    %c0 = arith.constant 0 : index
    %c0_0 = arith.constant 0 : index
    %c0_1 = arith.constant 0 : index
    %0 = vector.load %arg1[%c0, %c0_0, %c0_1] : memref<1x8x32xf32, #tpu.memory_space<vmem>>, vector<1x8x32xf32>
    %c0_2 = arith.constant 0 : index
    %c0_3 = arith.constant 0 : index
    %c0_4 = arith.constant 0 : index
    %1 = vector.load %arg2[%c0_2, %c0_3, %c0_4] : memref<1x1x8xf32, #tpu.memory_space<vmem>>, vector<1x1x8xf32>
    %cst = arith.constant 1.000000e+00 : f32
    %2 = vector.broadcast %cst : f32 to vector<1x1x32xf32>
    %3 = arith.mulf %0, %0 : vector<1x8x32xf32>
    "tpu.trace_start"() <{level = 10 : i32, message = "bkc,bnc->bkn"}> : () -> ()
    %cst_5 = arith.constant dense<0.000000e+00> : vector<1x1x8xf32>
    %4 = tpu.matmul %2, %3, %cst_5 {dimension_numbers = #tpu.dot_dimension_numbers<[2], [2], [1], [1], [0, 0, 0, 1, 1, 1], [0], [0]>} : vector<1x1x32xf32>, vector<1x8x32xf32>, vector<1x1x8xf32> -> vector<1x1x8xf32>
    "tpu.trace_stop"() : () -> ()
    %5 = math.sqrt %4 : vector<1x1x8xf32>
    %cst_6 = arith.constant 9.99999996E-13 : f32
    %6 = vector.broadcast %cst_6 : f32 to vector<1x1x8xf32>
    %7 = arith.maximumf %5, %6 : vector<1x1x8xf32>
    %cst_7 = arith.constant 1.000000e+00 : f32
    %8 = vector.broadcast %cst_7 : f32 to vector<1x1x8xf32>
    %9 = arith.divf %8, %7 : vector<1x1x8xf32>
    %10 = arith.mulf %1, %9 : vector<1x1x8xf32>
    "tpu.trace_start"() <{level = 10 : i32, message = "bkn,bnc->bkc"}> : () -> ()
    %cst_8 = arith.constant dense<0.000000e+00> : vector<1x1x32xf32>
    %11 = tpu.matmul %10, %0, %cst_8 {dimension_numbers = #tpu.dot_dimension_numbers<[2], [1], [1], [2], [0, 0, 0, 1, 1, 2], [0], [0]>} : vector<1x1x8xf32>, vector<1x8x32xf32>, vector<1x1x32xf32> -> vector<1x1x32xf32>
    "tpu.trace_stop"() : () -> ()
    "tpu.trace_start"() <{level = 10 : i32, message = "bkc,bnc->bkn"}> : () -> ()
    %cst_9 = arith.constant dense<0.000000e+00> : vector<1x1x8xf32>
    %12 = tpu.matmul %11, %0, %cst_9 {dimension_numbers = #tpu.dot_dimension_numbers<[2], [2], [1], [1], [0, 0, 0, 1, 1, 1], [0], [0]>} : vector<1x1x32xf32>, vector<1x8x32xf32>, vector<1x1x8xf32> -> vector<1x1x8xf32>
    "tpu.trace_stop"() : () -> ()
    %13 = arith.mulf %9, %12 : vector<1x1x8xf32>
    %cst_10 = arith.constant 1.000000e+00 : f32
    %14 = vector.broadcast %cst_10 : f32 to vector<1x1x8xf32>
    %15 = arith.subf %14, %1 : vector<1x1x8xf32>
    %cst_11 = arith.constant 9.990000e+02 : f32
    %16 = vector.broadcast %cst_11 : f32 to vector<1x1x8xf32>
    %17 = arith.mulf %15, %16 : vector<1x1x8xf32>
    %18 = arith.subf %13, %17 : vector<1x1x8xf32>
    %cst_12 = arith.constant dense<0xFF800000> : vector<1x1xf32>
    %19 = vector.multi_reduction <maximumf>, %18, %cst_12 [2] : vector<1x1x8xf32> to vector<1x1xf32>
    %20 = vector.shape_cast %19 : vector<1x1xf32> to vector<1x1x1xf32>
    %21 = tpu.iota {dimensions = array<i32: 2>} : vector<1x1x8xi32>
    %22 = vector.broadcast %20 : vector<1x1x1xf32> to vector<1x1x8xf32>
    %23 = arith.cmpf oge, %18, %22 : vector<1x1x8xf32>
    %c8_i32 = arith.constant 8 : i32
    %24 = vector.broadcast %c8_i32 : i32 to vector<1x1x8xi32>
    %25 = arith.select %23, %21, %24 : vector<1x1x8xi1>, vector<1x1x8xi32>
    %cst_13 = arith.constant dense<2147483647> : vector<1x1xi32>
    %26 = vector.multi_reduction <minsi>, %25, %cst_13 [2] : vector<1x1x8xi32> to vector<1x1xi32>
    %27 = vector.shape_cast %26 : vector<1x1xi32> to vector<1x1x1xi32>
    %28 = vector.broadcast %27 : vector<1x1x1xi32> to vector<1x1x8xi32>
    %29 = arith.cmpi eq, %21, %28 : vector<1x1x8xi32>
    %30 = arith.extui %29 : vector<1x1x8xi1> to vector<1x1x8xi32>
    %31 = arith.sitofp %30 : vector<1x1x8xi32> to vector<1x1x8xf32>
    "tpu.trace_start"() <{level = 10 : i32, message = "bkn,bnc->bkc"}> : () -> ()
    %cst_14 = arith.constant dense<0.000000e+00> : vector<1x1x32xf32>
    %32 = tpu.matmul %31, %0, %cst_14 {dimension_numbers = #tpu.dot_dimension_numbers<[2], [1], [1], [2], [0, 0, 0, 1, 1, 2], [0], [0]>} : vector<1x1x8xf32>, vector<1x8x32xf32>, vector<1x1x32xf32> -> vector<1x1x32xf32>
    "tpu.trace_stop"() : () -> ()
    %c0_15 = arith.constant 0 : index
    %c0_16 = arith.constant 0 : index
    %c0_17 = arith.constant 0 : index
    %33 = vector.load %arg3[%c0_15, %c0_16, %c0_17] : memref<1x1x32xf32, #tpu.memory_space<vmem>>, vector<1x1x32xf32>
    tpu.vector_store %arg3[%c0_15, %c0_16, %c0_17], %32 {strides = array<i32>} : memref<1x1x32xf32, #tpu.memory_space<vmem>>, vector<1x1x32xf32>,
    return
  }
  func.func @transform_0(%arg0: i32) -> (i32, i32, i32) {
    %c0_i32 = arith.constant 0 : i32
    %c0_i32_0 = arith.constant 0 : i32
    %c0_i32_1 = arith.constant 0 : i32
    return %arg0, %c0_i32, %c0_i32_0 : i32, i32, i32
  }
  func.func @transform_1(%arg0: i32) -> (i32, i32, i32) {
    %c0_i32 = arith.constant 0 : i32
    %c0_i32_0 = arith.constant 0 : i32
    %c0_i32_1 = arith.constant 0 : i32
    return %arg0, %c0_i32, %c0_i32_0 : i32, i32, i32
  }
  func.func @transform_2(%arg0: i32) -> (i32, i32, i32) {
    %c0_i32 = arith.constant 0 : i32
    %c0_i32_0 = arith.constant 0 : i32
    %c0_i32_1 = arith.constant 0 : i32
    return %arg0, %c0_i32, %c0_i32_0 : i32, i32, i32
  }
}

</mosaic_0001>

<llo_original>
// kernel: tpu_custom_call.1
$region0: #{tpu_custom_call.1}
  #allocation0 [shape = 'u32[]', space=smem, size = 0x4, offset = 0x4, fixed_abs, tag = 'smem constant byte address 0x4 - core index']
  #allocation1 [shape = 'u32[144,128]{1,0:T(1,128)}', space=vmem, size = 0x12000, scoped, tag = 'internal scratch']
  %s0 = inlined_call_operand.hbm [shape: f32[2,8,32], index: 0, kind: input, shape index: {}]
  %s1 = inlined_call_operand.hbm [shape: f32[2,1,8], index: 1, kind: input, shape index: {}]
  %s2 = inlined_call_operand.hbm [shape: f32[2,1,32], index: 2, kind: output, shape index: {}]
  %s3 = sld [smem:[#allocation0]]
  $region49: #{tpu_custom_call.1} parent=0
    _
  %s5 = ssub.s32 1, %s3
  %s6 = scalar_select 0, %s5, %s3
  $region1: #{tpu_custom_call.1} parent=0
    #allocation2 [shape = 'u8[8192]{0}', space=vmem, size = 0x2000, scoped, tag = 'input window, operand 0']
    #allocation3 [shape = 's32[2]{0}', space=sflag, size = 0x8, scoped, tag = 'scoped memory for tpu_custom_call.1']
    #allocation4 [shape = 's32[2]{0}', space=sflag, size = 0x8, scoped, tag = 'scoped memory for tpu_custom_call.1']
    #allocation5 [shape = 'u8[1024]{0}', space=vmem, size = 0x400, scoped, tag = 'input window, operand 1']
    #allocation6 [shape = 's32[2]{0}', space=sflag, size = 0x8, scoped, tag = 'scoped memory for tpu_custom_call.1']
    #allocation7 [shape = 'u8[1024]{0}', space=vmem, size = 0x400, scoped, tag = 'output window, operand 0']
    %7 = vsyncpa [#allocation3], 0
    %s8 = scalar_lea.sflag [#allocation3], 1
    %9 = vsyncpa %s8, 0
    %10 = vsyncpa [#allocation6], 0
    %s11 = scalar_lea.sflag [#allocation6], 1
    %12 = vsyncpa %s11, 0
    %13 = vsyncpa [#allocation4], 0
    %s14 = scalar_lea.sflag [#allocation4], 1
    %15 = vsyncpa %s14, 0
    loop: start=0, step=1, limit=4
    $region2: #{tpu_custom_call.1} parent=1 // loop_pre_header
      _
    $region3: #{tpu_custom_call.1} parent=1 // loop_header
      %s17 = sphi 0, %s21
      %p18 = scmp.ge.s32.totalorder %s17, 4
      %s27 = sphi 0, %s29
      %s30 = sphi 0, %s27
      %s31 = sphi 0, %s30
      %s47 = sphi 0, %s31
      %s53 = sphi 0, %s55
      %s56 = sphi 0, %s53
      %s57 = sphi 0, %s56
      %s73 = sphi 0, %s57
      %s79 = sphi 0, %s81
      %s82 = sphi 0, %s79
      %s83 = sphi 0, %s82
      %s99 = sphi 0, %s83
    $region4: #{tpu_custom_call.1} parent=1 // loop_header_branch
      %20 = sbr.rel (%p18) target = $region8
    $region5: #{tpu_custom_call.1} parent=1 // loop_body
      %s22 = ssub.s32 %s17, 1
      %s23 = ssub.s32 %s17, 2
      %s24 = sadd.s32 %s17, 1
      %s25 = ssub.s32 %s17, %s24
      %p26 = scmp.eq.s32.totalorder %s25, 0
      %s28 = sadd.s32 %s27, 1
      %s29 = scalar_select %p26, %s27, %s28
      %p32 = pneg %p26
      %p33 = scmp.eq.s32.totalorder %s17, 1
      %p34 = por %p32, %p33
      %p35 = scmp.ne.s32.totalorder %s27, %s30
      %p36 = scmp.eq.s32.totalorder %s17, 0
      %p37 = por %p35, %p36
      %p38 = scmp.ne.s32.totalorder %s27, %s30
      %p39 = scmp.eq.s32.totalorder %s22, 1
      %p40 = por %p38, %p39
      %p41 = scmp.ne.s32.totalorder %s30, %s31
      %p42 = scmp.eq.s32.totalorder %s22, 0
      %p43 = por %p41, %p42
      %p44 = scmp.ne.s32.totalorder %s30, %s31
      %p45 = scmp.eq.s32.totalorder %s23, 1
      %p46 = por %p44, %p45
      %p48 = scmp.ne.s32.totalorder %s31, %s47
      %p49 = scmp.eq.s32.totalorder %s23, 0
      %p50 = por %p48, %p49
      %s51 = ssub.s32 %s17, %s24
      %p52 = scmp.eq.s32.totalorder %s51, 0
      %s54 = sadd.s32 %s53, 1
      %s55 = scalar_select %p52, %s53, %s54
      %p58 = pneg %p52
      %p59 = scmp.eq.s32.totalorder %s17, 1
      %p60 = por %p58, %p59
      %p61 = scmp.ne.s32.totalorder %s53, %s56
      %p62 = scmp.eq.s32.totalorder %s17, 0
      %p63 = por %p61, %p62
      %p64 = scmp.ne.s32.totalorder %s53, %s56
      %p65 = scmp.eq.s32.totalorder %s22, 1
      %p66 = por %p64, %p65
      %p67 = scmp.ne.s32.totalorder %s56, %s57
      %p68 = scmp.eq.s32.totalorder %s22, 0
      %p69 = por %p67, %p68
      %p70 = scmp.ne.s32.totalorder %s56, %s57
      %p71 = scmp.eq.s32.totalorder %s23, 1
      %p72 = por %p70, %p71
      %p74 = scmp.ne.s32.totalorder %s57, %s73
      %p75 = scmp.eq.s32.totalorder %s23, 0
      %p76 = por %p74, %p75
      %s77 = ssub.s32 %s17, %s24
      %p78 = scmp.eq.s32.totalorder %s77, 0
      %s80 = sadd.s32 %s79, 1
      %s81 = scalar_select %p78, %s79, %s80
      %p84 = pneg %p78
      %p85 = scmp.eq.s32.totalorder %s17, 1
      %p86 = por %p84, %p85
      %p87 = scmp.ne.s32.totalorder %s79, %s82
      %p88 = scmp.eq.s32.totalorder %s17, 0
      %p89 = por %p87, %p88
      %p90 = scmp.ne.s32.totalorder %s79, %s82
      %p91 = scmp.eq.s32.totalorder %s22, 1
      %p92 = por %p90, %p91
      %p93 = scmp.ne.s32.totalorder %s82, %s83
      %p94 = scmp.eq.s32.totalorder %s22, 0
      %p95 = por %p93, %p94
      %p96 = scmp.ne.s32.totalorder %s82, %s83
      %p97 = scmp.eq.s32.totalorder %s23, 1
      %p98 = por %p96, %p97
      %p100 = scmp.ne.s32.totalorder %s83, %s99
      %p101 = scmp.eq.s32.totalorder %s23, 0
      %p102 = por %p100, %p101
      %p103 = scmp.le.s32.totalorder 1, %s17
      %p104 = scmp.lt.s32.totalorder %s17, 3
      %p105 = pnand %p103, %p104
      %p106 = pneg %p105
      // Predicated region
      $region9: #{tpu_custom_call.1} parent=5 // pred_check
        _
      $region10: #{tpu_custom_call.1} parent=5 // pred_check_branch
        %108 = sbr.rel (%p105) target = $region12
      $region11: #{tpu_custom_call.1} parent=5 // pred_region
        %s109 = ssub.s32 %s17, 1
      $region12: #{tpu_custom_call.1} parent=5 // pred_fallthru
        _
      %p110 = scmp.lt.s32.totalorder %s17, 2
      // Predicated region
      $region13: #{tpu_custom_call.1} parent=5 // pred_check
        %p111 = pneg %p110
      $region14: #{tpu_custom_call.1} parent=5 // pred_check_branch
        %113 = sbr.rel (%p111) target = $region16
      $region15: #{tpu_custom_call.1} parent=5 // pred_region
        // Predicated region
        $region17: #{tpu_custom_call.1} parent=15 // pred_check
          %p114 = pneg %p37
        $region18: #{tpu_custom_call.1} parent=15 // pred_check_branch
          %116 = sbr.rel (%p114) target = $region20
        $region19: #{tpu_custom_call.1} parent=15 // pred_region
          %s117 = sand.u32 %s27, 1
          %s118 = scalar_lea.sflag [#allocation3], %s117
          %s119 = sand.u32 %s27, 1
          %s120 = smul.addr %s119, 8
          %s121 = scalar_lea.vmem [#allocation2], %s120
          %s123 = ssub.s32 128, 128
          %124 = vsyncadd %s118, %s123
          %s125 = smul.addr %s17, 128
          %s126 = scalar_lea.hbm %s0, %s125
          %s128 = sshll.u32 %s121, 4
          %s129 = int_to_ptr.vmem [resolvable:$true] %s128
          %131 = dma.hbm_to_vmem [thread:$0]  %s126, 128, %s129, %s118
        $region20: #{tpu_custom_call.1} parent=15 // pred_fallthru
          _
        // Predicated region
        $region21: #{tpu_custom_call.1} parent=15 // pred_check
          %p132 = pneg %p63
        $region22: #{tpu_custom_call.1} parent=15 // pred_check_branch
          %134 = sbr.rel (%p132) target = $region24
        $region23: #{tpu_custom_call.1} parent=15 // pred_region
          %s135 = sand.u32 %s53, 1
          %s136 = scalar_lea.sflag [#allocation6], %s135
          %s137 = sand.u32 %s53, 1
          %s138 = scalar_lea.vmem [#allocation5], %s137
          %s140 = ssub.s32 16, 16
          %141 = vsyncadd %s136, %s140
          %s142 = smul.addr %s17, 16
          %s143 = scalar_lea.hbm %s1, %s142
          %s145 = sshll.u32 %s138, 4
          %s146 = int_to_ptr.vmem [resolvable:$true] %s145
          %148 = dma.hbm_to_vmem [thread:$0]  %s143, 16, %s146, %s136
        $region24: #{tpu_custom_call.1} parent=15 // pred_fallthru
          _
      $region16: #{tpu_custom_call.1} parent=5 // pred_fallthru
        _
      %p149 = scmp.le.s32.totalorder 1, %s17
      %p150 = scmp.lt.s32.totalorder %s17, 3
      %p151 = pnand %p149, %p150
      %p152 = pneg %p151
      // Predicated region
      $region25: #{tpu_custom_call.1} parent=5 // pred_check
        _
      $region26: #{tpu_custom_call.1} parent=5 // pred_check_branch
        %154 = sbr.rel (%p151) target = $region28
      $region27: #{tpu_custom_call.1} parent=5 // pred_region
        %s155 = ssub.s32 %s17, 1
        %s156 = sand.u32 %s30, 1
        %s157 = scalar_lea.sflag [#allocation3], %s156
        %s158 = sand.u32 %s30, 1
        %s159 = smul.addr %s158, 8
        %s160 = scalar_lea.vmem [#allocation2], %s159
        // Predicated region
        $region29: #{tpu_custom_call.1} parent=27 // pred_check
          %p161 = pneg %p43
        $region30: #{tpu_custom_call.1} parent=27 // pred_check_branch
          %163 = sbr.rel (%p161) target = $region32
        $region31: #{tpu_custom_call.1} parent=27 // pred_region
          %164 = dma.done %s157, 128
        $region32: #{tpu_custom_call.1} parent=27 // pred_fallthru
          _
        %s165 = sand.u32 %s56, 1
        %s166 = scalar_lea.sflag [#allocation6], %s165
        %s167 = sand.u32 %s56, 1
        %s168 = scalar_lea.vmem [#allocation5], %s167
        // Predicated region
        $region33: #{tpu_custom_call.1} parent=27 // pred_check
          %p169 = pneg %p69
        $region34: #{tpu_custom_call.1} parent=27 // pred_check_branch
          %171 = sbr.rel (%p169) target = $region36
        $region35: #{tpu_custom_call.1} parent=27 // pred_region
          %172 = dma.done %s166, 16
        $region36: #{tpu_custom_call.1} parent=27 // pred_fallthru
          _
        %s173 = sand.u32 %s30, 1
        %s174 = scalar_lea.sflag [#allocation3], %s173
        %s175 = sand.u32 %s30, 1
        %s176 = smul.addr %s175, 8
        %s177 = scalar_lea.vmem [#allocation2], %s176
        %p178 = pneg %p43
        %p179 = pneg %p40
        %s180 = sand.u32 %s56, 1
        %s181 = scalar_lea.sflag [#allocation6], %s180
        %s182 = sand.u32 %s56, 1
        %s183 = scalar_lea.vmem [#allocation5], %s182
        %p184 = pneg %p69
        %p185 = pneg %p66
        %p186 = pneg %p95
        %p187 = pneg %p92
        %s188 = sand.u32 %s82, 1
        %s189 = scalar_lea.sflag [#allocation4], %s188
        %s190 = sand.u32 %s82, 1
        %s191 = scalar_lea.vmem [#allocation7], %s190
        %v192 = vld [vmem:[%s160] sm:$0xff]
        %v193 = vld [vmem:[%s168] sm:$0x1]
        %v194 = vmul.f32 %v192, %v192
        %vm195 = vcmask 261120
        %v197 = vsel %vm195, 1.0, 0
        %v200 = vsel %vm195, %v194, 0
        %202 = vmatprep.subr.mxu0 0.0
        %203 = vmatpush1.xpose.msra.mxu0 0.0
        %204 = vmatprep.subr.mxu0 0.0
        %205 = vmatpush1.xpose.msra.mxu0 0.0
        %206 = vmatprep.subr.mxu0 0.0
        %207 = vmatpush1.xpose.msra.mxu0 0.0
        %208 = vmatprep.subr.mxu0 0.0
        %209 = vmatpush1.xpose.msra.mxu0 0.0
        %210 = vmatprep.subr.mxu0 0.0
        %211 = vmatpush1.xpose.msra.mxu0 0.0
        %212 = vmatprep.subr.mxu0 0.0
        %213 = vmatpush1.xpose.msra.mxu0 0.0
        %214 = vmatprep.subr.mxu0 0.0
        %215 = vmatpush1.xpose.msra.mxu0 0.0
        %216 = vmatprep.subr.mxu0 0.0
        %217 = vmatpush1.xpose.msra.mxu0 0.0
        %218 = vmatprep.subr.mxu0 0.0
        %219 = vmatpush1.xpose.msra.mxu0 0.0
        %220 = vmatprep.subr.mxu0 0.0
        %221 = vmatpush1.xpose.msra.mxu0 0.0
        %222 = vmatprep.subr.mxu0 0.0
        %223 = vmatpush1.xpose.msra.mxu0 0.0
        %224 = vmatprep.subr.mxu0 0.0
        %225 = vmatpush1.xpose.msra.mxu0 0.0
        %226 = vmatprep.subr.mxu0 0.0
        %227 = vmatpush1.xpose.msra.mxu0 0.0
        %228 = vmatprep.subr.mxu0 0.0
        %229 = vmatpush1.xpose.msra.mxu0 0.0
        %230 = vmatprep.subr.mxu0 0.0
        %231 = vmatpush1.xpose.msra.mxu0 0.0
        %232 = vmatprep.subr.mxu0 0.0
        %233 = vmatpush1.xpose.msra.mxu0 %v200
        %234 = vmatprep.subr.mxu0 0.0
        %235 = vmatpush2.xpose.msra.mxu0 0.0
        %236 = vmatprep.subr.mxu0 0.0
        %237 = vmatpush2.xpose.msra.mxu0 0.0
        %238 = vmatprep.subr.mxu0 0.0
        %239 = vmatpush2.xpose.msra.mxu0 0.0
        %240 = vmatprep.subr.mxu0 0.0
        %241 = vmatpush2.xpose.msra.mxu0 0.0
        %242 = vmatprep.subr.mxu0 0.0
        %243 = vmatpush2.xpose.msra.mxu0 0.0
        %244 = vmatprep.subr.mxu0 0.0
        %245 = vmatpush2.xpose.msra.mxu0 0.0
        %246 = vmatprep.subr.mxu0 0.0
        %247 = vmatpush2.xpose.msra.mxu0 0.0
        %248 = vmatprep.subr.mxu0 0.0
        %249 = vmatpush2.xpose.msra.mxu0 0.0
        %250 = vmatprep.subr.mxu0 0.0
        %251 = vmatpush2.xpose.msra.mxu0 0.0
        %252 = vmatprep.subr.mxu0 0.0
        %253 = vmatpush2.xpose.msra.mxu0 0.0
        %254 = vmatprep.subr.mxu0 0.0
        %255 = vmatpush2.xpose.msra.mxu0 0.0
        %256 = vmatprep.subr.mxu0 0.0
        %257 = vmatpush2.xpose.msra.mxu0 0.0
        %258 = vmatprep.subr.mxu0 0.0
        %259 = vmatpush2.xpose.msra.mxu0 0.0
        %260 = vmatprep.subr.mxu0 0.0
        %261 = vmatpush2.xpose.msra.mxu0 0.0
        %262 = vmatprep.subr.mxu0 0.0
        %263 = vmatpush2.xpose.msra.mxu0 0.0
        %264 = vmatprep.subr.mxu0 0.0
        %265 = vmatpush2.xpose.msra.mxu0 0.0
        %266 = vmatprep.mubr.f32.mxu0 0.0
        %267 = vmatmul.mubr.f32.gmra.mxu0 %v197
        %v268 = vpop.f32.mrf.mxu0
        %v269 = vadd.f32 0.0, %v268
        %v270 = vpop.f32.mrf.mxu0
        %271 = vdwg.mxu0
        %v272 = vrsqrt.pop %v269
        %v273 = vmul.f32 %v269, %v272
        %vm274 = vcmp.eq.f32.partialorder %v269, inf
        %v275 = vsel %vm274, %v269, %v273
        %vm276 = vcmp.eq.f32.partialorder %v269, 0.0
        %v277 = vand.u32 %v269, 2147483648
        %v278 = vsel %vm276, %v277, %v275
        %v279 = vmax.f32 %v278, 1e-12
        %v280 = vrcp.pop %v279
        %v281 = vmul.f32 1.0, %v280
        %v282 = vmul.f32 %v193, %v281
        %vm283 = vcmask 64512
        %v285 = vsel %vm283, %v282, 0
        %287 = vmatprep.subr.mxu0 0.0
        %288 = vmatpush1.msra.mxu0 0.0
        %289 = vmatprep.subr.mxu0 0.0
        %290 = vmatpush1.msra.mxu0 0.0
        %291 = vmatprep.subr.mxu0 0.0
        %292 = vmatpush1.msra.mxu0 0.0
        %293 = vmatprep.subr.mxu0 0.0
        %294 = vmatpush1.msra.mxu0 0.0
        %295 = vmatprep.subr.mxu0 0.0
        %296 = vmatpush1.msra.mxu0 0.0
        %297 = vmatprep.subr.mxu0 0.0
        %298 = vmatpush1.msra.mxu0 0.0
        %299 = vmatprep.subr.mxu0 0.0
        %300 = vmatpush1.msra.mxu0 0.0
        %301 = vmatprep.subr.mxu0 0.0
        %302 = vmatpush1.msra.mxu0 0.0
        %303 = vmatprep.subr.mxu0 0.0
        %304 = vmatpush1.msra.mxu0 0.0
        %305 = vmatprep.subr.mxu0 0.0
        %306 = vmatpush1.msra.mxu0 0.0
        %307 = vmatprep.subr.mxu0 0.0
        %308 = vmatpush1.msra.mxu0 0.0
        %309 = vmatprep.subr.mxu0 0.0
        %310 = vmatpush1.msra.mxu0 0.0
        %311 = vmatprep.subr.mxu0 0.0
        %312 = vmatpush1.msra.mxu0 0.0
        %313 = vmatprep.subr.mxu0 0.0
        %314 = vmatpush1.msra.mxu0 0.0
        %315 = vmatprep.subr.mxu0 0.0
        %316 = vmatpush1.msra.mxu0 0.0
        %317 = vmatprep.subr.mxu0 0.0
        %318 = vmatpush1.msra.mxu0 %v192
        %319 = vmatprep.subr.mxu0 0.0
        %320 = vmatpush2.msra.mxu0 0.0
        %321 = vmatprep.subr.mxu0 0.0
        %322 = vmatpush2.msra.mxu0 0.0
        %323 = vmatprep.subr.mxu0 0.0
        %324 = vmatpush2.msra.mxu0 0.0
        %325 = vmatprep.subr.mxu0 0.0
        %326 = vmatpush2.msra.mxu0 0.0
        %327 = vmatprep.subr.mxu0 0.0
        %328 = vmatpush2.msra.mxu0 0.0
        %329 = vmatprep.subr.mxu0 0.0
        %330 = vmatpush2.msra.mxu0 0.0
        %331 = vmatprep.subr.mxu0 0.0
        %332 = vmatpush2.msra.mxu0 0.0
        %333 = vmatprep.subr.mxu0 0.0
        %334 = vmatpush2.msra.mxu0 0.0
        %335 = vmatprep.subr.mxu0 0.0
        %336 = vmatpush2.msra.mxu0 0.0
        %337 = vmatprep.subr.mxu0 0.0
        %338 = vmatpush2.msra.mxu0 0.0
        %339 = vmatprep.subr.mxu0 0.0
        %340 = vmatpush2.msra.mxu0 0.0
        %341 = vmatprep.subr.mxu0 0.0
        %342 = vmatpush2.msra.mxu0 0.0
        %343 = vmatprep.subr.mxu0 0.0
        %344 = vmatpush2.msra.mxu0 0.0
        %345 = vmatprep.subr.mxu0 0.0
        %346 = vmatpush2.msra.mxu0 0.0
        %347 = vmatprep.subr.mxu0 0.0
        %348 = vmatpush2.msra.mxu0 0.0
        %349 = vmatprep.subr.mxu0 0.0
        %350 = vmatpush2.msra.mxu0 0.0
        %351 = vmatprep.mubr.f32.mxu0 0.0
        %352 = vmatmul.mubr.f32.gmra.mxu0 %v285
        %v353 = vpop.f32.mrf.mxu0
        %v354 = vadd.f32 0.0, %v353
        %v355 = vpop.f32.mrf.mxu0
        %356 = vdwg.mxu0
        %v358 = vsel %vm195, %v354, 0
        %v361 = vsel %vm195, %v192, 0
        %363 = vmatprep.subr.mxu0 0.0
        %364 = vmatpush1.xpose.msra.mxu0 0.0
        %365 = vmatprep.subr.mxu0 0.0
        %366 = vmatpush1.xpose.msra.mxu0 0.0
        %367 = vmatprep.subr.mxu0 0.0
        %368 = vmatpush1.xpose.msra.mxu0 0.0
        %369 = vmatprep.subr.mxu0 0.0
        %370 = vmatpush1.xpose.msra.mxu0 0.0
        %371 = vmatprep.subr.mxu0 0.0
        %372 = vmatpush1.xpose.msra.mxu0 0.0
        %373 = vmatprep.subr.mxu0 0.0
        %374 = vmatpush1.xpose.msra.mxu0 0.0
        %375 = vmatprep.subr.mxu0 0.0
        %376 = vmatpush1.xpose.msra.mxu0 0.0
        %377 = vmatprep.subr.mxu0 0.0
        %378 = vmatpush1.xpose.msra.mxu0 0.0
        %379 = vmatprep.subr.mxu0 0.0
        %380 = vmatpush1.xpose.msra.mxu0 0.0
        %381 = vmatprep.subr.mxu0 0.0
        %382 = vmatpush1.xpose.msra.mxu0 0.0
        %383 = vmatprep.subr.mxu0 0.0
        %384 = vmatpush1.xpose.msra.mxu0 0.0
        %385 = vmatprep.subr.mxu0 0.0
        %386 = vmatpush1.xpose.msra.mxu0 0.0
        %387 = vmatprep.subr.mxu0 0.0
        %388 = vmatpush1.xpose.msra.mxu0 0.0
        %389 = vmatprep.subr.mxu0 0.0
        %390 = vmatpush1.xpose.msra.mxu0 0.0
        %391 = vmatprep.subr.mxu0 0.0
        %392 = vmatpush1.xpose.msra.mxu0 0.0
        %393 = vmatprep.subr.mxu0 0.0
        %394 = vmatpush1.xpose.msra.mxu0 %v361
        %395 = vmatprep.subr.mxu0 0.0
        %396 = vmatpush2.xpose.msra.mxu0 0.0
        %397 = vmatprep.subr.mxu0 0.0
        %398 = vmatpush2.xpose.msra.mxu0 0.0
        %399 = vmatprep.subr.mxu0 0.0
        %400 = vmatpush2.xpose.msra.mxu0 0.0
        %401 = vmatprep.subr.mxu0 0.0
        %402 = vmatpush2.xpose.msra.mxu0 0.0
        %403 = vmatprep.subr.mxu0 0.0
        %404 = vmatpush2.xpose.msra.mxu0 0.0
        %405 = vmatprep.subr.mxu0 0.0
        %406 = vmatpush2.xpose.msra.mxu0 0.0
        %407 = vmatprep.subr.mxu0 0.0
        %408 = vmatpush2.xpose.msra.mxu0 0.0
        %409 = vmatprep.subr.mxu0 0.0
        %410 = vmatpush2.xpose.msra.mxu0 0.0
        %411 = vmatprep.subr.mxu0 0.0
        %412 = vmatpush2.xpose.msra.mxu0 0.0
        %413 = vmatprep.subr.mxu0 0.0
        %414 = vmatpush2.xpose.msra.mxu0 0.0
        %415 = vmatprep.subr.mxu0 0.0
        %416 = vmatpush2.xpose.msra.mxu0 0.0
        %417 = vmatprep.subr.mxu0 0.0
        %418 = vmatpush2.xpose.msra.mxu0 0.0
        %419 = vmatprep.subr.mxu0 0.0
        %420 = vmatpush2.xpose.msra.mxu0 0.0
        %421 = vmatprep.subr.mxu0 0.0
        %422 = vmatpush2.xpose.msra.mxu0 0.0
        %423 = vmatprep.subr.mxu0 0.0
        %424 = vmatpush2.xpose.msra.mxu0 0.0
        %425 = vmatprep.subr.mxu0 0.0
        %426 = vmatpush2.xpose.msra.mxu0 0.0
        %427 = vmatprep.mubr.f32.mxu0 0.0
        %428 = vmatmul.mubr.f32.gmra.mxu0 %v358
        %v429 = vpop.f32.mrf.mxu0
        %v430 = vadd.f32 0.0, %v429
        %v431 = vpop.f32.mrf.mxu0
        %432 = vdwg.mxu0
        %v433 = vmul.f32 %v281, %v430
        %v434 = vsub.f32 1.0, %v193
        %v435 = vmul.f32 %v434, 999.0
        %v436 = vsub.f32 %v433, %v435
        %vm437 = vcmask 57344
        %v438 = vsel %vm437, %v436, -inf
        %439 = vmax.xlane.f32.xlu0 %v438
        %v440 = vpop.xlane.xlu0 %439
        %v441 = vlaneseq
        %v442 = vand.u32 %v441, 127
        %vm443 = vcmp.ge.f32.partialorder %v436, %v440
        %v444 = vsel %vm443, %v442, 8
        %v445 = vsel %vm437, %v444, 2147483647
        %v446 = vand.u32 %v445, 65535
        %v447 = vshra.s32 %v445, 16
        %v448 = vcvt.s32.f32 %v446
        %v449 = vcvt.s32.f32 %v447
        %450 = vmin.xlane.f32.xlu0 %v449
        %v451 = vpop.xlane.xlu0 %450
        %vm452 = vcmp.eq.f32.partialorder %v449, %v451
        %v453 = vsel %vm452, %v448, inf
        %454 = vmin.xlane.f32.xlu0 %v453
        %v455 = vpop.xlane.xlu0 %454
        %v456 = vcvt.f32.s32 %v455
        %v457 = vcvt.f32.s32 %v451
        %v458 = vshll.u32 %v457, 16
        %v459 = vadd.s32 %v458, %v456
        %vm460 = vcmp.eq.s32.totalorder %v442, %v459
        %v461 = vsel %vm460, 1, 0
        %v462 = vcvt.s32.f32 %v461
        %v464 = vsel %vm283, %v462, 0
        %466 = vmatprep.subr.mxu0 0.0
        %467 = vmatpush1.msra.mxu0 0.0
        %468 = vmatprep.subr.mxu0 0.0
        %469 = vmatpush1.msra.mxu0 0.0
        %470 = vmatprep.subr.mxu0 0.0
        %471 = vmatpush1.msra.mxu0 0.0
        %472 = vmatprep.subr.mxu0 0.0
        %473 = vmatpush1.msra.mxu0 0.0
        %474 = vmatprep.subr.mxu0 0.0
        %475 = vmatpush1.msra.mxu0 0.0
        %476 = vmatprep.subr.mxu0 0.0
        %477 = vmatpush1.msra.mxu0 0.0
        %478 = vmatprep.subr.mxu0 0.0
        %479 = vmatpush1.msra.mxu0 0.0
        %480 = vmatprep.subr.mxu0 0.0
        %481 = vmatpush1.msra.mxu0 0.0
        %482 = vmatprep.subr.mxu0 0.0
        %483 = vmatpush1.msra.mxu0 0.0
        %484 = vmatprep.subr.mxu0 0.0
        %485 = vmatpush1.msra.mxu0 0.0
        %486 = vmatprep.subr.mxu0 0.0
        %487 = vmatpush1.msra.mxu0 0.0
        %488 = vmatprep.subr.mxu0 0.0
        %489 = vmatpush1.msra.mxu0 0.0
        %490 = vmatprep.subr.mxu0 0.0
        %491 = vmatpush1.msra.mxu0 0.0
        %492 = vmatprep.subr.mxu0 0.0
        %493 = vmatpush1.msra.mxu0 0.0
        %494 = vmatprep.subr.mxu0 0.0
        %495 = vmatpush1.msra.mxu0 0.0
        %496 = vmatprep.subr.mxu0 0.0
        %497 = vmatpush1.msra.mxu0 %v192
        %498 = vmatprep.subr.mxu0 0.0
        %499 = vmatpush2.msra.mxu0 0.0
        %500 = vmatprep.subr.mxu0 0.0
        %501 = vmatpush2.msra.mxu0 0.0
        %502 = vmatprep.subr.mxu0 0.0
        %503 = vmatpush2.msra.mxu0 0.0
        %504 = vmatprep.subr.mxu0 0.0
        %505 = vmatpush2.msra.mxu0 0.0
        %506 = vmatprep.subr.mxu0 0.0
        %507 = vmatpush2.msra.mxu0 0.0
        %508 = vmatprep.subr.mxu0 0.0
        %509 = vmatpush2.msra.mxu0 0.0
        %510 = vmatprep.subr.mxu0 0.0
        %511 = vmatpush2.msra.mxu0 0.0
        %512 = vmatprep.subr.mxu0 0.0
        %513 = vmatpush2.msra.mxu0 0.0
        %514 = vmatprep.subr.mxu0 0.0
        %515 = vmatpush2.msra.mxu0 0.0
        %516 = vmatprep.subr.mxu0 0.0
        %517 = vmatpush2.msra.mxu0 0.0
        %518 = vmatprep.subr.mxu0 0.0
        %519 = vmatpush2.msra.mxu0 0.0
        %520 = vmatprep.subr.mxu0 0.0
        %521 = vmatpush2.msra.mxu0 0.0
        %522 = vmatprep.subr.mxu0 0.0
        %523 = vmatpush2.msra.mxu0 0.0
        %524 = vmatprep.subr.mxu0 0.0
        %525 = vmatpush2.msra.mxu0 0.0
        %526 = vmatprep.subr.mxu0 0.0
        %527 = vmatpush2.msra.mxu0 0.0
        %528 = vmatprep.subr.mxu0 0.0
        %529 = vmatpush2.msra.mxu0 0.0
        %530 = vmatprep.mubr.f32.mxu0 0.0
        %531 = vmatmul.mubr.f32.gmra.mxu0 %v464
        %v532 = vpop.f32.mrf.mxu0
        %v533 = vadd.f32 0.0, %v532
        %v534 = vpop.f32.mrf.mxu0
        %535 = vdwg.mxu0
        %vm536 = vcmask 253952
        %537 = vst.msk [vmem:[%s191] sm:$0x1] %vm536, %v533
        %s538 = sand.u32 %s82, 1
        %s539 = scalar_lea.sflag [#allocation4], %s538
        %s540 = sand.u32 %s82, 1
        %s541 = scalar_lea.vmem [#allocation7], %s540
        // Predicated region
        $region37: #{tpu_custom_call.1} parent=27 // pred_check
          %p542 = pneg %p92
        $region38: #{tpu_custom_call.1} parent=27 // pred_check_branch
          %544 = sbr.rel (%p542) target = $region40
        $region39: #{tpu_custom_call.1} parent=27 // pred_region
          %s546 = ssub.s32 16, 16
          %547 = vsyncadd %s539, %s546
          %s548 = smul.addr %s22, 16
          %s549 = scalar_lea.hbm %s2, %s548
          %s551 = sshll.u32 %s541, 4
          %s552 = int_to_ptr.vmem [resolvable:$true] %s551
          %554 = dma.vmem_to_hbm [thread:$0]  %s552, 16, %s549, %s539
        $region40: #{tpu_custom_call.1} parent=27 // pred_fallthru
          _
      $region28: #{tpu_custom_call.1} parent=5 // pred_fallthru
        _
      %p555 = scmp.le.s32.totalorder 2, %s17
      // Predicated region
      $region41: #{tpu_custom_call.1} parent=5 // pred_check
        %p556 = pneg %p555
      $region42: #{tpu_custom_call.1} parent=5 // pred_check_branch
        %558 = sbr.rel (%p556) target = $region44
      $region43: #{tpu_custom_call.1} parent=5 // pred_region
        %s559 = ssub.s32 %s17, 2
        // Predicated region
        $region45: #{tpu_custom_call.1} parent=43 // pred_check
          %p560 = pneg %p98
        $region46: #{tpu_custom_call.1} parent=43 // pred_check_branch
          %562 = sbr.rel (%p560) target = $region48
        $region47: #{tpu_custom_call.1} parent=43 // pred_region
          %s563 = sand.u32 %s83, 1
          %s564 = scalar_lea.sflag [#allocation4], %s563
          %s565 = sand.u32 %s83, 1
          %s566 = scalar_lea.vmem [#allocation7], %s565
          %567 = dma.done %s564, 16
        $region48: #{tpu_custom_call.1} parent=43 // pred_fallthru
          _
      $region44: #{tpu_custom_call.1} parent=5 // pred_fallthru
        _
    $region6: #{tpu_custom_call.1} parent=1 // loop_footer
      %s21 = sadd.s32 1, %s17
    $region7: #{tpu_custom_call.1} parent=1 // loop_footer_branch
      %16 = sbr.rel target = $region3
    $region8: #{tpu_custom_call.1} parent=1 // loop_exit
      _
    %568 = vsyncpa [#allocation3], 1
    %s569 = scalar_lea.sflag [#allocation3], 1
    %570 = vsyncpa %s569, 1
    %571 = vsyncpa [#allocation6], 1
    %s572 = scalar_lea.sflag [#allocation6], 1
    %573 = vsyncpa %s572, 1
    %574 = vsyncpa [#allocation4], 1
    %s575 = scalar_lea.sflag [#allocation4], 1
    %576 = vsyncpa %s575, 1

</llo_original>
